<compile_context>
chip_gen: v6e
topology: v6e:2x2x1
jax: 0.10.0
libtpu: 0.0.40
codegen_flags: <defaults>
</compile_context>

<pallas_src>
import jax
import jax.numpy as jnp
from jax.experimental import pallas as pl
from jax.experimental.pallas import tpu as pltpu


def _identity_kernel(x_ref, o_ref):
    # Pure DMA-bound pass-through of the current VMEM tile; no per-element compute.
    o_ref[...] = x_ref[...]


_LANE_CANDIDATES = (8192, 4096, 2048, 1024, 512, 256, 128)  # largest first
_TARGET_BLOCK_BYTES = 4 * 1024 * 1024  # ~4 MiB blocks: roofline-friendly, VMEM-safe on v7x


def _sublane_multiple(dtype):
    itemsize = jnp.dtype(dtype).itemsize
    return {4: 8, 2: 16, 1: 32}.get(itemsize, 8)


def _pick_lanes(total, sublane):
    divisors = [c for c in _LANE_CANDIDATES if total % c == 0]
    if not divisors:
        return None
    for c in divisors:  # prefer the widest lane dim that still gives >= one sublane tile of rows
        if total // c >= sublane:
            return c
    return divisors[0]  # tiny input: single full-array block


def pre_correction_forward(batch, returns=None):
    """Identity forward matching PreCorrection.forward(batch, returns=None) -> batch."""
    total = batch.size
    dtype = batch.dtype
    if total == 0:
        return batch

    sublane = _sublane_multiple(dtype)
    itemsize = jnp.dtype(dtype).itemsize

    lanes = _pick_lanes(total, sublane)
    if lanes is None:
        # Flat length not a multiple of 128: padding would add two extra HBM passes
        # for an op that is a pure identity, so the zero-copy passthrough is both
        # exact and optimal here.
        return batch

    rows = total // lanes

    if rows <= sublane:
        # Single block equal to the full array dims; the (sublane, 128) divisibility
        # rule does not apply when the block spans the whole array.
        tile_rows = rows
    else:
        # Target multi-MiB blocks, rounded to a sublane multiple. The ragged last
        # block (rows not divisible by tile_rows) is handled by the cdiv grid with
        # masked boundary writes — no shrink loop, no degenerate 8-row tiles.
        tile_rows = max(
            sublane,
            (_TARGET_BLOCK_BYTES // (lanes * itemsize)) // sublane * sublane,
        )
        tile_rows = min(tile_rows, rows // sublane * sublane)

    grid = (pl.cdiv(rows, tile_rows),)
    x2d = batch.reshape(rows, lanes)  # bitcast-style view, no pad / no tail slice

    out2d = pl.pallas_call(
        _identity_kernel,
        out_shape=jax.ShapeDtypeStruct((rows, lanes), dtype),
        grid_spec=pltpu.PrefetchScalarGridSpec(
            num_scalar_prefetch=0,
            grid=grid,
            in_specs=[pl.BlockSpec((tile_rows, lanes), lambda i: (i, 0))],
            out_specs=pl.BlockSpec((tile_rows, lanes), lambda i: (i, 0)),
        ),
        compiler_params=pltpu.CompilerParams(
            dimension_semantics=("parallel",),  # lets v7x shard the copy across both TCs
        ),
        # Identity: allow XLA to reuse the input buffer for the output and elide the copy.
        input_output_aliases={0: 0},
    )(x2d)

    return out2d.reshape(batch.shape)


if __name__ == "__main__":
    key = jax.random.PRNGKey(0)
    # Small NCHW batch consistent with a typical conv-style input.
    x = jax.random.normal(key, (2, 4, 16, 16), dtype=jnp.float32)

    y = jax.jit(pre_correction_forward)(x)
    jax.block_until_ready(y)

    assert y.shape == x.shape and y.dtype == x.dtype
    assert bool(jnp.allclose(y, x)), "identity forward mismatch"
    print("KERNEL_OK")
</pallas_src>

<mosaic_0001>
module attributes {stable_mosaic.version = 11 : i64} {
  func.func @_identity_kernel(%arg0: i32, %arg1: memref<8x256xf32, #tpu.memory_space<vmem>>, %arg2: memref<8x256xf32, #tpu.memory_space<vmem>>) attributes {dimension_semantics = [#tpu.dimension_semantics<parallel>], iteration_bounds = array<i64: 1>, scalar_prefetch = 0 : i64, scratch_operands = 0 : i64, tpu.core_type = #tpu.core_type<tc>, window_params = [{transform_indices = @transform_0, window_bounds = array<i64: 8, 256>}, {transform_indices = @transform_1, window_bounds = array<i64: 8, 256>}]} {
    %c0 = arith.constant 0 : index
    %c0_0 = arith.constant 0 : index
    %0 = vector.load %arg1[%c0, %c0_0] : memref<8x256xf32, #tpu.memory_space<vmem>>, vector<8x256xf32>
    %c0_1 = arith.constant 0 : index
    %c0_2 = arith.constant 0 : index
    %1 = vector.load %arg2[%c0_1, %c0_2] : memref<8x256xf32, #tpu.memory_space<vmem>>, vector<8x256xf32>
    tpu.vector_store %arg2[%c0_1, %c0_2], %0 {strides = array<i32>} : memref<8x256xf32, #tpu.memory_space<vmem>>, vector<8x256xf32>,
    return
  }
  func.func @transform_0(%arg0: i32) -> (i32, i32) {
    %c0_i32 = arith.constant 0 : i32
    %c0_i32_0 = arith.constant 0 : i32
    return %arg0, %c0_i32 : i32, i32
  }
  func.func @transform_1(%arg0: i32) -> (i32, i32) {
    %c0_i32 = arith.constant 0 : i32
    %c0_i32_0 = arith.constant 0 : i32
    return %arg0, %c0_i32 : i32, i32
  }
}

</mosaic_0001>

<llo_original>
// kernel: pre_correction_forward.1
$region0: #{pre_correction_forward.1}
  #allocation0 [shape = 'u32[]', space=smem, size = 0x4, offset = 0x4, fixed_abs, tag = 'smem constant byte address 0x4 - core index']
  #allocation1 [shape = 'u32[144,128]{1,0:T(1,128)}', space=vmem, size = 0x12000, scoped, tag = 'internal scratch']
  %s0 = inlined_call_operand.vmem [shape: f32[8,256], index: 0, kind: input, shape index: {}, may-alias: {0,1}]
  %s1 = inlined_call_operand.vmem [shape: f32[8,256], index: 1, kind: output, shape index: {}, may-alias: {0,1}]
  %s2 = sld [smem:[#allocation0]]
  $region14: #{pre_correction_forward.1} parent=0
    _
  %s4 = ssub.s32 1, %s2
  %s5 = scalar_select 0, %s4, %s2
  // Predicated region
  $region2: #{pre_correction_forward.1} parent=0 // pred_check
    _
  $region3: #{pre_correction_forward.1} parent=0 // pred_check_branch
    %7 = sbr.rel (0) target = $region5
  $region4: #{pre_correction_forward.1} parent=0 // pred_region
    _
  $region5: #{pre_correction_forward.1} parent=0 // pred_fallthru
    _
  %v8 = vld [vmem:[%s0] sm:$0xff]
  %v9 = vld [vmem:[%s0 + $0x8] sm:$0xff]
  %10 = vst [vmem:[%s1] sm:$0xff] %v8
  %11 = vst [vmem:[%s1 + $0x8] sm:$0xff] %v9
  // Predicated region
  $region6: #{pre_correction_forward.1} parent=0 // pred_check
    _
  $region7: #{pre_correction_forward.1} parent=0 // pred_check_branch
    %13 = sbr.rel (0) target = $region9
  $region8: #{pre_correction_forward.1} parent=0 // pred_region
    _
  $region9: #{pre_correction_forward.1} parent=0 // pred_fallthru
    _
  // Predicated region
  $region10: #{pre_correction_forward.1} parent=0 // pred_check
    _
  $region11: #{pre_correction_forward.1} parent=0 // pred_check_branch
    %15 = sbr.rel (0) target = $region13
  $region12: #{pre_correction_forward.1} parent=0 // pred_region
    _
  $region13: #{pre_correction_forward.1} parent=0 // pred_fallthru
    _

</llo_original>
